<compile_context>
chip_gen: v7x
topology: tpu7x:2x2x1
jax: 0.10.0
libtpu: 0.0.40
codegen_flags: <defaults>
</compile_context>

<pallas_src>
import jax
import jax.numpy as jnp
from jax.experimental import pallas as pl
from jax.experimental.pallas import tpu as pltpu

LANE = 128                      # vreg lane width: last dim of the tiled layout
TARGET_BLOCK_BYTES = 4 << 20    # per-array block target (2-4 MiB sweet spot)
VMEM_BUDGET_BYTES = 24 << 20    # double-buffered working-set budget (safe on v5e/v6e/v7x)

_REDUCTION_MODES = ("none", "mean", "sum")


# ---------------------------------------------------------------------------
# static helpers
# ---------------------------------------------------------------------------
def _round_up(x, m):
    return ((x + m - 1) // m) * m


def _cdiv(a, b):
    return (a + b - 1) // b


def _is_multi_tensorcore_chip():
    """Only v7x exposes 2 TensorCores worth splitting the stream over."""
    try:
        dev = jax.devices()[0]
        if dev.platform != "tpu":
            return False
        kind = (getattr(dev, "device_kind", "") or "").lower()
        return "v7" in kind
    except Exception:
        return False


def _layout(rows, itemsize_max, num_streamed_arrays):
    """Static tiling: byte-sized blocks, balanced across cores, no host padding."""
    blk_bytes = min(TARGET_BLOCK_BYTES,
                    max(LANE * itemsize_max * 8,
                        VMEM_BUDGET_BYTES // (2 * num_streamed_arrays)))
    max_block_rows = max(8, (blk_bytes // (LANE * itemsize_max)) // 8 * 8)
    npar = 2 if (_is_multi_tensorcore_chip() and rows >= 16) else 1
    block_rows = max(8, min(max_block_rows,
                            _round_up(_cdiv(rows, npar), 8),
                            (rows // 8) * 8))
    blocks_total = _cdiv(rows, block_rows)
    steps = _cdiv(blocks_total, npar)
    needs_mask = (npar * steps * block_rows) != rows
    return block_rows, npar, steps, blocks_total, needs_mask


def _split_main_tail(x):
    """View x as a lane-dense (rows, 128) slab plus a <128-element tail.

    When x.size is a multiple of 128 (common for image tensors) this is a pure
    reshape: no jnp.pad, no trailing slice copy.
    """
    total = x.size
    rows = total // LANE
    if rows == 0:
        return None, x.reshape(-1)
    if rows * LANE == total:
        return x.reshape(rows, LANE), None
    flat = x.reshape(-1)
    # TODO(synk): ragged (non-128-multiple) inputs still pay one slice copy here;
    # removable with a 1-D BlockSpec + full in-kernel tail mask.
    return (jax.lax.slice(flat, (0,), (rows * LANE,)).reshape(rows, LANE),
            jax.lax.slice(flat, (rows * LANE,), (total,)))


def _tail_loss_f32(p, t, w=None):
    d = p.astype(jnp.float32) - t.astype(jnp.float32)
    loss = jnp.log(d * d)
    if w is not None:
        loss = loss * w.astype(jnp.float32)
    return loss


def _compiler_params(semantics, block_rows, itemsizes):
    vmem = 2 * block_rows * LANE * sum(itemsizes) + (4 << 20)  # bufs + margin
    vmem = int(min(max(vmem, 8 << 20), 48 << 20))
    return pltpu.CompilerParams(dimension_semantics=semantics,
                                vmem_limit_bytes=vmem)


# ---------------------------------------------------------------------------
# Pallas kernels
# ---------------------------------------------------------------------------
def _make_sum_kernel(rows, block_rows, steps, needs_mask, weighted):
    """Accumulate per-lane partial sums of [w *] log((p - t)^2) over the
    'arbitrary' grid axis into a (1, 128) f32 scratch; finalize on last step."""

    def kernel(*refs):
        if weighted:
            p_ref, t_ref, w_ref, out_l_ref, out_w_ref, acc_l_ref, acc_w_ref = refs
        else:
            p_ref, t_ref, out_l_ref, acc_l_ref = refs
        step = pl.program_id(1)

        @pl.when(step == 0)
        def _init():
            acc_l_ref[...] = jnp.zeros_like(acc_l_ref)
            if weighted:
                acc_w_ref[...] = jnp.zeros_like(acc_w_ref)

        d = p_ref[...].astype(jnp.float32) - t_ref[...].astype(jnp.float32)
        if weighted:
            w = w_ref[...].astype(jnp.float32)
        if needs_mask:
            row0 = (pl.program_id(0) * steps + step) * block_rows
            gidx = row0 + jax.lax.broadcasted_iota(jnp.int32, (block_rows, LANE), 0)
            valid = gidx < rows
            d = jnp.where(valid, d, 1.0)      # log(1^2) == 0 on out-of-range rows
            if weighted:
                w = jnp.where(valid, w, 0.0)
        term = jnp.log(d * d)
        if weighted:
            acc_l_ref[...] += jnp.sum(w * term, axis=0, keepdims=True)
            acc_w_ref[...] += jnp.sum(w, axis=0, keepdims=True)
        else:
            acc_l_ref[...] += jnp.sum(term, axis=0, keepdims=True)

        @pl.when(step == steps - 1)
        def _finalize():
            out_l_ref[...] = acc_l_ref[...].reshape(1, 1, LANE)
            if weighted:
                out_w_ref[...] = acc_w_ref[...].reshape(1, 1, LANE)

    return kernel


def _map_kernel(p_ref, t_ref, o_ref):
    d = p_ref[...].astype(jnp.float32) - t_ref[...].astype(jnp.float32)
    o_ref[...] = jnp.log(d * d).astype(o_ref.dtype)


def _map_weighted_kernel(p_ref, t_ref, w_ref, o_ref):
    d = p_ref[...].astype(jnp.float32) - t_ref[...].astype(jnp.float32)
    o_ref[...] = (w_ref[...].astype(jnp.float32) * jnp.log(d * d)).astype(o_ref.dtype)


# ---------------------------------------------------------------------------
# pallas_call wrappers
# ---------------------------------------------------------------------------
def _reduce_call(p2, t2, w2=None):
    """Per-lane partial sums of [w *] log((p - t)^2) (and sum(w)) over (rows,128)."""
    rows = p2.shape[0]
    arrays = [p2, t2] + ([w2] if w2 is not None else [])
    itemsizes = [a.dtype.itemsize for a in arrays]
    block_rows, npar, steps, blocks_total, needs_mask = _layout(
        rows, max(itemsizes), len(arrays))
    last_block = blocks_total - 1

    def in_map(p, i, _steps=steps, _last=last_block):
        # Trailing "dead" blocks (from rounding blocks across cores) just
        # re-read the last valid block; the in-kernel mask zeroes their term.
        return (jnp.minimum(p * _steps + i, _last), 0)

    in_spec = pl.BlockSpec((block_rows, LANE), in_map)
    out_spec = pl.BlockSpec((1, 1, LANE), lambda p, i: (p, 0, 0))
    out_one = jax.ShapeDtypeStruct((npar, 1, LANE), jnp.float32)

    total_elems = rows * LANE
    n_out = 2 if w2 is not None else 1
    cost = pl.CostEstimate(
        flops=5 * total_elems,
        transcendentals=total_elems,
        bytes_accessed=int(sum(a.size * a.dtype.itemsize for a in arrays)
                           + n_out * npar * LANE * 4))
    params = _compiler_params(("parallel", "arbitrary"), block_rows, itemsizes)
    kernel = _make_sum_kernel(rows, block_rows, steps, needs_mask,
                              weighted=w2 is not None)

    if w2 is None:
        partial = pl.pallas_call(
            kernel,
            out_shape=out_one,
            grid=(npar, steps),
            in_specs=[in_spec, in_spec],
            out_specs=out_spec,
            scratch_shapes=[pltpu.VMEM((1, LANE), jnp.float32)],
            compiler_params=params,
            cost_estimate=cost,
        )(p2, t2)
        return jnp.sum(partial)

    part_l, part_w = pl.pallas_call(
        kernel,
        out_shape=(out_one, out_one),
        grid=(npar, steps),
        in_specs=[in_spec, in_spec, in_spec],
        out_specs=(out_spec, out_spec),
        scratch_shapes=[pltpu.VMEM((1, LANE), jnp.float32),
                        pltpu.VMEM((1, LANE), jnp.float32)],
        compiler_params=params,
        cost_estimate=cost,
    )(p2, t2, w2)
    return jnp.sum(part_l), jnp.sum(part_w)


def _map_call(p2, t2, w2, out_dtype):
    """Elementwise (optionally weighted) log((p - t)^2) over (rows, 128)."""
    rows = p2.shape[0]
    ins = [p2, t2] + ([w2] if w2 is not None else [])
    itemsizes = [a.dtype.itemsize for a in ins] + [jnp.dtype(out_dtype).itemsize]
    block_rows, _, _, blocks_total, _ = _layout(rows, max(itemsizes), len(itemsizes))

    spec = pl.BlockSpec((block_rows, LANE), lambda i: (i, 0))
    total_elems = rows * LANE
    cost = pl.CostEstimate(
        flops=4 * total_elems,
        transcendentals=total_elems,
        bytes_accessed=int(sum(a.size * a.dtype.itemsize for a in ins)
                           + total_elems * jnp.dtype(out_dtype).itemsize))
    params = _compiler_params(("parallel",), block_rows, itemsizes)
    out_shape = jax.ShapeDtypeStruct((rows, LANE), out_dtype)

    if w2 is None:
        return pl.pallas_call(
            _map_kernel, out_shape=out_shape, grid=(blocks_total,),
            in_specs=[spec, spec], out_specs=spec,
            compiler_params=params, cost_estimate=cost)(p2, t2)
    return pl.pallas_call(
        _map_weighted_kernel, out_shape=out_shape, grid=(blocks_total,),
        in_specs=[spec, spec, spec], out_specs=spec,
        compiler_params=params, cost_estimate=cost)(p2, t2, w2)


# ---------------------------------------------------------------------------
# reduction wrappers (main slab via kernel, tiny tail in plain JAX)
# ---------------------------------------------------------------------------
def _sum_log_sq_err(pred, target):
    p_main, p_tail = _split_main_tail(pred)
    t_main, t_tail = _split_main_tail(target)
    total = jnp.zeros((), jnp.float32)
    if p_main is not None:
        if p_main.shape[0] >= 8:
            total = total + _reduce_call(p_main, t_main)
        else:
            total = total + jnp.sum(_tail_loss_f32(p_main, t_main))
    if p_tail is not None:
        total = total + jnp.sum(_tail_loss_f32(p_tail, t_tail))
    return total


def _weighted_sum_log_sq_err(pred, target, weight):
    p_main, p_tail = _split_main_tail(pred)
    t_main, t_tail = _split_main_tail(target)
    w_main, w_tail = _split_main_tail(weight)
    sum_l = jnp.zeros((), jnp.float32)
    sum_w = jnp.zeros((), jnp.float32)
    if p_main is not None:
        if p_main.shape[0] >= 8:
            sl, sw = _reduce_call(p_main, t_main, w_main)
        else:
            sl = jnp.sum(_tail_loss_f32(p_main, t_main, w_main))
            sw = jnp.sum(w_main.astype(jnp.float32))
        sum_l, sum_w = sum_l + sl, sum_w + sw
    if p_tail is not None:
        sum_l = sum_l + jnp.sum(_tail_loss_f32(p_tail, t_tail, w_tail))
        sum_w = sum_w + jnp.sum(w_tail.astype(jnp.float32))
    return sum_l, sum_w


def _log_sq_err_map(pred, target, weight=None, out_dtype=None):
    if out_dtype is None:
        out_dtype = (pred.dtype if jnp.issubdtype(jnp.dtype(pred.dtype), jnp.floating)
                     else jnp.float32)
    p_main, p_tail = _split_main_tail(pred)
    t_main, t_tail = _split_main_tail(target)
    w_main = w_tail = None
    if weight is not None:
        w_main, w_tail = _split_main_tail(weight)

    pieces = []
    if p_main is not None:
        if p_main.shape[0] >= 8:
            out2 = _map_call(p_main, t_main, w_main, out_dtype)
        else:
            out2 = _tail_loss_f32(p_main, t_main, w_main).astype(out_dtype)
        pieces.append(out2.reshape(-1))
    if p_tail is not None:
        pieces.append(_tail_loss_f32(p_tail, t_tail, w_tail).astype(out_dtype))
    flat = pieces[0] if len(pieces) == 1 else jnp.concatenate(pieces)
    return flat.reshape(pred.shape)


# ---------------------------------------------------------------------------
# public API (mirrors the PyTorch module)
# ---------------------------------------------------------------------------
def log_mse_loss(pred, target, weight=None, reduction="mean", loss_weight=1.0):
    if reduction not in _REDUCTION_MODES:
        raise ValueError(f"Unsupported reduction mode: {reduction}. "
                         f"Supported ones are: {list(_REDUCTION_MODES)}")
    assert pred.shape == target.shape, (pred.shape, target.shape)
    if weight is not None and weight.shape != pred.shape:
        weight = jnp.broadcast_to(weight, pred.shape)

    if reduction == "none":
        return loss_weight * _log_sq_err_map(pred, target, weight)

    if weight is None:
        total = _sum_log_sq_err(pred, target)
        if reduction == "sum":
            return loss_weight * total
        return loss_weight * (total / pred.size)          # exact global mean

    sum_wl, sum_w = _weighted_sum_log_sq_err(pred, target, weight)
    if reduction == "sum":
        return loss_weight * sum_wl
    # weighted_loss docstring semantics: weighted mean == sum(loss*w) / sum(w).
    # (NaN/inf if sum(w) == 0, same as the reference.)
    return loss_weight * (sum_wl / sum_w)


class LogMSELoss:
    """JAX/Pallas equivalent of the PyTorch LogMSELoss module."""

    def __init__(self, loss_weight=1.0, reduction="mean"):
        if reduction not in _REDUCTION_MODES:
            raise ValueError(f"Unsupported reduction mode: {reduction}. "
                             f"Supported ones are: {list(_REDUCTION_MODES)}")
        self.loss_weight = loss_weight
        self.reduction = reduction

    def __call__(self, pred, target, weight=None, **kwargs):
        return log_mse_loss(pred, target, weight,
                            reduction=self.reduction,
                            loss_weight=self.loss_weight)


# ---------------------------------------------------------------------------
# pure-JAX reference (same math, no Pallas) for correctness checks
# ---------------------------------------------------------------------------
def _ref_log_mse_loss(pred, target, weight=None, reduction="mean", loss_weight=1.0):
    loss = jnp.log((pred.astype(jnp.float32) - target.astype(jnp.float32)) ** 2)
    if weight is not None:
        loss = loss * weight.astype(jnp.float32)
    if reduction == "none":
        return loss_weight * loss
    if reduction == "sum":
        return loss_weight * jnp.sum(loss)
    if weight is None:
        return loss_weight * jnp.mean(loss)
    return loss_weight * (jnp.sum(loss) / jnp.sum(weight.astype(jnp.float32)))


if __name__ == "__main__":
    key = jax.random.PRNGKey(0)
    k1, k2, k3 = jax.random.split(key, 3)

    # Primary shape: (N, C, H, W) with element count a multiple of 128
    shape = (2, 4, 16, 16)
    pred = jax.random.uniform(k1, shape, jnp.float32, 0.0, 255.0)
    target = jax.random.uniform(k2, shape, jnp.float32, 0.0, 255.0)
    weight = jax.random.uniform(k3, shape, jnp.float32, 0.0, 1.0)

    crit = LogMSELoss(loss_weight=1.0, reduction="mean")
    loss = jax.block_until_ready(crit(pred, target))
    ref = _ref_log_mse_loss(pred, target)
    assert jnp.isfinite(loss), loss
    assert jnp.allclose(loss, ref, atol=1e-4, rtol=1e-4), (loss, ref)

    loss_sum = jax.block_until_ready(log_mse_loss(pred, target, reduction="sum"))
    ref_sum = _ref_log_mse_loss(pred, target, reduction="sum")
    assert jnp.allclose(loss_sum, ref_sum, atol=1e-2, rtol=1e-4), (loss_sum, ref_sum)

    loss_none = jax.block_until_ready(log_mse_loss(pred, target, reduction="none"))
    ref_none = _ref_log_mse_loss(pred, target, reduction="none")
    assert loss_none.shape == shape
    assert jnp.allclose(loss_none, ref_none, atol=1e-4, rtol=1e-4)

    loss_w = jax.block_until_ready(log_mse_loss(pred, target, weight, reduction="mean"))
    ref_w = _ref_log_mse_loss(pred, target, weight, reduction="mean")
    assert jnp.allclose(loss_w, ref_w, atol=1e-4, rtol=1e-4), (loss_w, ref_w)

    # Ragged shape: exercises the in-kernel row mask + <128-element tail path.
    shape2 = (3, 4, 20, 20)
    p2 = jax.random.uniform(k1, shape2, jnp.float32, 0.0, 255.0)
    t2 = jax.random.uniform(k2, shape2, jnp.float32, 0.0, 255.0)
    w2 = jax.random.uniform(k3, shape2, jnp.float32, 0.0, 1.0)
    for red in ("mean", "sum", "none"):
        got = jax.block_until_ready(log_mse_loss(p2, t2, w2, reduction=red))
        want = _ref_log_mse_loss(p2, t2, w2, reduction=red)
        assert got.shape == want.shape
        assert jnp.allclose(got, want, atol=1e-3, rtol=1e-4), (red, got, want)
    got = jax.block_until_ready(log_mse_loss(p2, t2, reduction="mean"))
    want = _ref_log_mse_loss(p2, t2, reduction="mean")
    assert jnp.allclose(got, want, atol=1e-4, rtol=1e-4), (got, want)

    print("KERNEL_OK")
</pallas_src>

<mosaic_0001>
module attributes {stable_mosaic.version = 11 : i64} {
  func.func @kernel(%arg0: i32, %arg1: i32, %arg2: memref<16x128xf32, #tpu.memory_space<vmem>>, %arg3: memref<16x128xf32, #tpu.memory_space<vmem>>, %arg4: memref<1x1x128xf32, #tpu.memory_space<vmem>>, %arg5: memref<1x128xf32, #tpu.memory_space<vmem>>) attributes {dimension_semantics = [#tpu.dimension_semantics<parallel>, #tpu.dimension_semantics<arbitrary>], iteration_bounds = array<i64: 1, 1>, scalar_prefetch = 0 : i64, scratch_operands = 1 : i64, tpu.core_type = #tpu.core_type<tc>, window_params = [{transform_indices = @transform_0, window_bounds = array<i64: 16, 128>}, {transform_indices = @transform_1, window_bounds = array<i64: 16, 128>}, {transform_indices = @transform_2, window_bounds = array<i64: 1, 1, 128>}]} {
    %c0_i32 = arith.constant 0 : i32
    %0 = arith.cmpi eq, %arg1, %c0_i32 : i32
    %1 = arith.extui %0 : i1 to i32
    %c0_i32_0 = arith.constant 0 : i32
    %2 = arith.cmpi ne, %1, %c0_i32_0 : i32
    scf.if %2 {
      %cst_10 = arith.constant 0.000000e+00 : f32
      %16 = vector.broadcast %cst_10 : f32 to vector<1x128xf32>
      %c0_11 = arith.constant 0 : index
      %c0_12 = arith.constant 0 : index
      %17 = vector.load %arg5[%c0_11, %c0_12] : memref<1x128xf32, #tpu.memory_space<vmem>>, vector<1x128xf32>
      tpu.vector_store %arg5[%c0_11, %c0_12], %16 {strides = array<i32>} : memref<1x128xf32, #tpu.memory_space<vmem>>, vector<1x128xf32>,
    } else {
    }
    %c0 = arith.constant 0 : index
    %c0_1 = arith.constant 0 : index
    %3 = vector.load %arg2[%c0, %c0_1] : memref<16x128xf32, #tpu.memory_space<vmem>>, vector<16x128xf32>
    %c0_2 = arith.constant 0 : index
    %c0_3 = arith.constant 0 : index
    %4 = vector.load %arg3[%c0_2, %c0_3] : memref<16x128xf32, #tpu.memory_space<vmem>>, vector<16x128xf32>
    %5 = arith.subf %3, %4 : vector<16x128xf32>
    %6 = arith.mulf %5, %5 : vector<16x128xf32>
    %7 = math.log %6 : vector<16x128xf32>
    %c0_4 = arith.constant 0 : index
    %c0_5 = arith.constant 0 : index
    %8 = vector.load %arg5[%c0_4, %c0_5] : memref<1x128xf32, #tpu.memory_space<vmem>>, vector<1x128xf32>
    %cst = arith.constant dense<0.000000e+00> : vector<128xf32>
    %9 = vector.multi_reduction <add>, %7, %cst [0] : vector<16x128xf32> to vector<128xf32>
    %10 = vector.shape_cast %9 : vector<128xf32> to vector<1x128xf32>
    %11 = arith.addf %8, %10 : vector<1x128xf32>
    %c0_6 = arith.constant 0 : index
    %c0_7 = arith.constant 0 : index
    %12 = vector.load %arg5[%c0_6, %c0_7] : memref<1x128xf32, #tpu.memory_space<vmem>>, vector<1x128xf32>
    tpu.vector_store %arg5[%c0_6, %c0_7], %11 {strides = array<i32>} : memref<1x128xf32, #tpu.memory_space<vmem>>, vector<1x128xf32>,
    %c0_i32_8 = arith.constant 0 : i32
    %13 = arith.cmpi eq, %arg1, %c0_i32_8 : i32
    %14 = arith.extui %13 : i1 to i32
    %c0_i32_9 = arith.constant 0 : i32
    %15 = arith.cmpi ne, %14, %c0_i32_9 : i32
    scf.if %15 {
      %c0_10 = arith.constant 0 : index
      %c0_11 = arith.constant 0 : index
      %16 = vector.load %arg5[%c0_10, %c0_11] : memref<1x128xf32, #tpu.memory_space<vmem>>, vector<1x128xf32>
      %17 = vector.shape_cast %16 : vector<1x128xf32> to vector<1x1x128xf32>
      %c0_12 = arith.constant 0 : index
      %c0_13 = arith.constant 0 : index
      %c0_14 = arith.constant 0 : index
      %18 = vector.load %arg4[%c0_12, %c0_13, %c0_14] : memref<1x1x128xf32, #tpu.memory_space<vmem>>, vector<1x1x128xf32>
      tpu.vector_store %arg4[%c0_12, %c0_13, %c0_14], %17 {strides = array<i32>} : memref<1x1x128xf32, #tpu.memory_space<vmem>>, vector<1x1x128xf32>,
    } else {
    }
    return
  }
  func.func @transform_0(%arg0: i32, %arg1: i32) -> (i32, i32) {
    %c1_i32 = arith.constant 1 : i32
    %0 = arith.muli %arg0, %c1_i32 : i32
    %1 = arith.addi %0, %arg1 : i32
    %c0_i32 = arith.constant 0 : i32
    %2 = arith.minsi %1, %c0_i32 : i32
    %c0_i32_0 = arith.constant 0 : i32
    %c0_i32_1 = arith.constant 0 : i32
    return %2, %c0_i32_0 : i32, i32
  }
  func.func @transform_1(%arg0: i32, %arg1: i32) -> (i32, i32) {
    %c1_i32 = arith.constant 1 : i32
    %0 = arith.muli %arg0, %c1_i32 : i32
    %1 = arith.addi %0, %arg1 : i32
    %c0_i32 = arith.constant 0 : i32
    %2 = arith.minsi %1, %c0_i32 : i32
    %c0_i32_0 = arith.constant 0 : i32
    %c0_i32_1 = arith.constant 0 : i32
    return %2, %c0_i32_0 : i32, i32
  }
  func.func @transform_2(%arg0: i32, %arg1: i32) -> (i32, i32, i32) {
    %c0_i32 = arith.constant 0 : i32
    %c0_i32_0 = arith.constant 0 : i32
    %c0_i32_1 = arith.constant 0 : i32
    return %arg0, %c0_i32, %c0_i32_0 : i32, i32, i32
  }
}

</mosaic_0001>

<llo_original>
// kernel: tpu_custom_call.1
$region0: #{tpu_custom_call.1}
  #allocation0 [shape = 'u32[]', space=smem, size = 0x4, offset = 0x4, fixed_abs, tag = 'smem constant byte address 0x4 - core index']
  #allocation1 [shape = 'u32[144,128]{1,0:T(1,128)}', space=vmem, size = 0x12000, scoped, tag = 'internal scratch']
  #allocation2 [shape = 'f32[1,128]{1,0:T(1,128)}', space=vmem, size = 0x200, scoped, tag = 'scratch operand']
  %s0 = inlined_call_operand.hbm [shape: f32[16,128], index: 0, kind: input, shape index: {}]
  %s1 = inlined_call_operand.hbm [shape: f32[16,128], index: 1, kind: input, shape index: {}]
  %s2 = inlined_call_operand.hbm [shape: f32[1,1,128], index: 2, kind: output, shape index: {}]
  %s3 = sld [smem:[#allocation0]]
  $region34: #{tpu_custom_call.1} parent=0
    _
  %s5 = ssub.s32 1, %s3
  %s6 = scalar_select 0, %s5, %s3
  $region1: #{tpu_custom_call.1} parent=0
    #allocation3 [shape = 'u8[8192]{0}', space=vmem, size = 0x2000, scoped, tag = 'input window, operand 0, single buffered']
    #allocation4 [shape = 's32[1]{0}', space=sflag, size = 0x4, scoped, tag = 'scoped memory for tpu_custom_call.1']
    #allocation5 [shape = 's32[1]{0}', space=sflag, size = 0x4, scoped, tag = 'scoped memory for tpu_custom_call.1']
    #allocation6 [shape = 'u8[8192]{0}', space=vmem, size = 0x2000, scoped, tag = 'input window, operand 1, single buffered']
    #allocation7 [shape = 's32[1]{0}', space=sflag, size = 0x4, scoped, tag = 'scoped memory for tpu_custom_call.1']
    #allocation8 [shape = 'u8[512]{0}', space=vmem, size = 0x400, scoped, tag = 'output window, operand 0, single buffered']
    %7 = vsyncpa [#allocation4], 0
    %8 = vsyncpa [#allocation7], 0
    %9 = vsyncpa [#allocation5], 0
    // Predicated region
    $region2: #{tpu_custom_call.1} parent=1 // pred_check
      _
    $region3: #{tpu_custom_call.1} parent=1 // pred_check_branch
      %11 = sbr.rel (0) target = $region5
    $region4: #{tpu_custom_call.1} parent=1 // pred_region
      %s12 = sadd.s32 0, 0
      %p13 = scmp.lt.s32.totalorder %s12, 0
      %s14 = scalar_select %p13, %s12, 0
      %s15 = smul.u32 2, %s14
      %s17 = ssub.s32 256, 256
      %18 = vsyncadd [#allocation4], %s17
      %s19 = smul.addr %s15, 128
      %s20 = scalar_lea.hbm %s0, %s19
      %s21 = sshll.u32 [#allocation3], 4
      %s22 = int_to_ptr.vmem [resolvable:$true] %s21
      %27 = dma.hbm_to_vmem [thread:$0]  %s20, 256, %s22, [#allocation4], 128, 128, 8
    $region5: #{tpu_custom_call.1} parent=1 // pred_fallthru
      _
    // Predicated region
    $region6: #{tpu_custom_call.1} parent=1 // pred_check
      _
    $region7: #{tpu_custom_call.1} parent=1 // pred_check_branch
      %29 = sbr.rel (0) target = $region9
    $region8: #{tpu_custom_call.1} parent=1 // pred_region
      %s30 = sadd.s32 0, 0
      %p31 = scmp.lt.s32.totalorder %s30, 0
      %s32 = scalar_select %p31, %s30, 0
      %s33 = smul.u32 2, %s32
      %s35 = ssub.s32 256, 256
      %36 = vsyncadd [#allocation7], %s35
      %s37 = smul.addr %s33, 128
      %s38 = scalar_lea.hbm %s1, %s37
      %s39 = sshll.u32 [#allocation6], 4
      %s40 = int_to_ptr.vmem [resolvable:$true] %s39
      %45 = dma.hbm_to_vmem [thread:$0]  %s38, 256, %s40, [#allocation7], 128, 128, 8
    $region9: #{tpu_custom_call.1} parent=1 // pred_fallthru
      _
    // Predicated region
    $region10: #{tpu_custom_call.1} parent=1 // pred_check
      _
    $region11: #{tpu_custom_call.1} parent=1 // pred_check_branch
      %47 = sbr.rel (0) target = $region13
    $region12: #{tpu_custom_call.1} parent=1 // pred_region
      %48 = dma.done [#allocation4], 256
    $region13: #{tpu_custom_call.1} parent=1 // pred_fallthru
      _
    // Predicated region
    $region14: #{tpu_custom_call.1} parent=1 // pred_check
      _
    $region15: #{tpu_custom_call.1} parent=1 // pred_check_branch
      %50 = sbr.rel (0) target = $region17
    $region16: #{tpu_custom_call.1} parent=1 // pred_region
      %51 = dma.done [#allocation7], 256
    $region17: #{tpu_custom_call.1} parent=1 // pred_fallthru
      _
    %s52 = sadd.s32 0, 0
    %p53 = scmp.lt.s32.totalorder %s52, 0
    %s54 = scalar_select %p53, %s52, 0
    %s55 = smul.u32 2, %s54
    %s56 = sadd.s32 0, 0
    %p57 = scmp.lt.s32.totalorder %s56, 0
    %s58 = scalar_select %p57, %s56, 0
    %s59 = smul.u32 2, %s58
    %p60 = scmp.eq.s32.totalorder 0, 0
    // Predicated region
    $region18: #{tpu_custom_call.1} parent=1 // pred_check
      %p61 = pneg %p60
    $region19: #{tpu_custom_call.1} parent=1 // pred_check_branch
      %63 = sbr.rel (%p61) target = $region21
    $region20: #{tpu_custom_call.1} parent=1 // pred_region
      %64 = vst [vmem:[#allocation2] sm:$0x1] 0.0
    $region21: #{tpu_custom_call.1} parent=1 // pred_fallthru
      _
    %v65 = vld [vmem:[#allocation3] sm:$0xff]
    %v66 = vld [vmem:[#allocation3 + $0x8] sm:$0xff]
    %v67 = vld [vmem:[#allocation6] sm:$0xff]
    %v68 = vld [vmem:[#allocation6 + $0x8] sm:$0xff]
    %v69 = vsub.f32 %v65, %v67
    %v70 = vsub.f32 %v66, %v68
    %v71 = vmul.f32 %v69, %v69
    %v72 = vmul.f32 %v70, %v70
    %v73 = vlog2.pop %v71
    %v74 = vmul.f32 %v73, 0.6931472
    %v75 = vlog2.pop %v72
    %v76 = vmul.f32 %v75, 0.6931472
    %v77 = vld [vmem:[#allocation2] sm:$0x1]
    %v78 = vadd.f32 %v74, %v76
    %v79 = vrot.slane %v78, 4
    %v80 = vadd.f32 %v78, %v79
    %v81 = vrot.slane %v80, 2
    %v82 = vadd.f32 %v80, %v81
    %v83 = vrot.slane %v82, 1
    %v84 = vadd.f32 %v82, %v83
    %v85 = vadd.f32 %v77, %v84
    %86 = vst [vmem:[#allocation2] sm:$0x1] %v85
    // Predicated region
    $region22: #{tpu_custom_call.1} parent=1 // pred_check
      %p87 = pneg %p60
    $region23: #{tpu_custom_call.1} parent=1 // pred_check_branch
      %89 = sbr.rel (%p87) target = $region25
    $region24: #{tpu_custom_call.1} parent=1 // pred_region
      %v90 = vld [vmem:[#allocation2] sm:$0x1]
      %91 = vst [vmem:[#allocation8] sm:$0x1] %v90
    $region25: #{tpu_custom_call.1} parent=1 // pred_fallthru
      _
    // Predicated region
    $region26: #{tpu_custom_call.1} parent=1 // pred_check
      _
    $region27: #{tpu_custom_call.1} parent=1 // pred_check_branch
      %93 = sbr.rel (0) target = $region29
    $region28: #{tpu_custom_call.1} parent=1 // pred_region
      %s95 = ssub.s32 16, 16
      %96 = vsyncadd [#allocation5], %s95
      %s98 = sshll.u32 [#allocation8], 4
      %s99 = int_to_ptr.vmem [resolvable:$true] %s98
      %101 = dma.vmem_to_hbm [thread:$0]  %s99, 16, %s2, [#allocation5]
    $region29: #{tpu_custom_call.1} parent=1 // pred_fallthru
      _
    // Predicated region
    $region30: #{tpu_custom_call.1} parent=1 // pred_check
      _
    $region31: #{tpu_custom_call.1} parent=1 // pred_check_branch
      %103 = sbr.rel (0) target = $region33
    $region32: #{tpu_custom_call.1} parent=1 // pred_region
      %104 = dma.done [#allocation5], 16
    $region33: #{tpu_custom_call.1} parent=1 // pred_fallthru
      _
    %105 = vsyncpa [#allocation4], 1
    %106 = vsyncpa [#allocation7], 1
    %107 = vsyncpa [#allocation5], 1

</llo_original>
